<compile_context>
chip_gen: v7x
topology: tpu7x:2x2x1
jax: 0.10.0
libtpu: 0.0.40
codegen_flags: <defaults>
</compile_context>

<pallas_src>
import functools
import math

import jax
import jax.numpy as jnp
from jax import lax
from jax.experimental import pallas as pl
from jax.experimental.pallas import tpu as pltpu


# ----------------------------------------------------------------------------- constants / helpers

_VMEM_LIMIT_BYTES = 48 * 1024 * 1024   # > v5e 16 MiB / v6e 32 MiB scoped defaults, < v7x 64 MiB phys
_NEG_INF = -1e9                        # matches the reference's masked_fill(mask, -1e9)


def _cparams(dims):
    return pltpu.CompilerParams(dimension_semantics=dims,
                                vmem_limit_bytes=_VMEM_LIMIT_BYTES)


def _pick_tile(dim, target, granule):
    """Largest tile <= target that is a multiple of `granule` and divides `dim`; else the full dim.
    TODO(synk): at production shapes, pad the array instead of relying on the full-dim fallback
    (a full-dim tile can exceed VMEM or force masked partial stores)."""
    if dim <= target:
        return dim
    t = (target // granule) * granule
    while t >= granule:
        if dim % t == 0:
            return t
        t -= granule
    return dim


def _pad_to_multiple(n, m):
    return ((n + m - 1) // m) * m


def _weight_spec(shape, index_map, n_buffers=None):
    """BlockSpec for a streamed weight; requests deeper multi-buffering when supported."""
    if n_buffers is not None:
        try:
            return pl.BlockSpec(shape, index_map, pipeline_mode=pl.Buffered(n_buffers))
        except Exception:   # pipeline_mode / pl.Buffered unavailable on this jax version
            pass
    return pl.BlockSpec(shape, index_map)


# ----------------------------------------------------------------------------- matmul kernels

def _matmul_bias_kernel_1k(x_ref, w_ref, b_ref, o_ref):
    # single K tile: no reduction axis, no VMEM accumulator (review: drop acc when K-grid == 1)
    o_ref[...] = (jnp.dot(x_ref[...], w_ref[...], preferred_element_type=jnp.float32)
                  + b_ref[...]).astype(o_ref.dtype)


def _matmul_nobias_kernel_1k(x_ref, w_ref, o_ref):
    o_ref[...] = jnp.dot(x_ref[...], w_ref[...],
                         preferred_element_type=jnp.float32).astype(o_ref.dtype)


def _matmul_bias_kernel(x_ref, w_ref, b_ref, o_ref, acc_ref):
    # grid = (M//tm, N//tn, K//tk); K innermost reduction; f32 VMEM accumulator (output is bf16).
    @pl.when(pl.program_id(2) == 0)
    def _():
        acc_ref[...] = jnp.zeros_like(acc_ref)

    acc_ref[...] += jnp.dot(x_ref[...], w_ref[...], preferred_element_type=jnp.float32)

    @pl.when(pl.program_id(2) == pl.num_programs(2) - 1)
    def _():
        o_ref[...] = (acc_ref[...] + b_ref[...]).astype(o_ref.dtype)


def _matmul_nobias_kernel(x_ref, w_ref, o_ref, acc_ref):
    @pl.when(pl.program_id(2) == 0)
    def _():
        acc_ref[...] = jnp.zeros_like(acc_ref)

    acc_ref[...] += jnp.dot(x_ref[...], w_ref[...], preferred_element_type=jnp.float32)

    @pl.when(pl.program_id(2) == pl.num_programs(2) - 1)
    def _():
        o_ref[...] = acc_ref[...].astype(o_ref.dtype)


def _matmul_residual_ln_kernel(x_ref, w_ref, b_ref, r_ref, g_ref, be_ref, o_ref, acc_ref, *, eps):
    # out = LayerNorm(residual + x @ w + b); LN over the full feature axis (N not tiled).
    k = pl.program_id(1)

    @pl.when(k == 0)
    def _():
        acc_ref[...] = jnp.zeros_like(acc_ref)

    acc_ref[...] += jnp.dot(x_ref[...], w_ref[...], preferred_element_type=jnp.float32)

    @pl.when(k == pl.num_programs(1) - 1)
    def _():
        y = acc_ref[...] + b_ref[...] + r_ref[...].astype(jnp.float32)
        mu = jnp.mean(y, axis=-1, keepdims=True)
        var = jnp.mean(jnp.square(y - mu), axis=-1, keepdims=True)
        o_ref[...] = ((y - mu) * lax.rsqrt(var + eps) * g_ref[...] + be_ref[...]).astype(o_ref.dtype)


def _ffn_residual_ln_kernel(x_ref, w1_ref, b1_ref, w2_ref, b2_ref, r_ref, g_ref, be_ref,
                            o_ref, acc_ref, *, eps):
    # out = LayerNorm(residual + relu(x@w1+b1) @ w2 + b2); d_ff tiled as the reduction axis.
    j = pl.program_id(1)

    @pl.when(j == 0)
    def _():
        acc_ref[...] = jnp.zeros_like(acc_ref)

    h = jnp.dot(x_ref[...], w1_ref[...], preferred_element_type=jnp.float32) + b1_ref[...]
    h = jnp.maximum(h, 0.0).astype(x_ref.dtype)   # bf16 for the second MXU pass (review item)
    acc_ref[...] += jnp.dot(h, w2_ref[...], preferred_element_type=jnp.float32)

    @pl.when(j == pl.num_programs(1) - 1)
    def _():
        y = acc_ref[...] + b2_ref[...] + r_ref[...].astype(jnp.float32)
        mu = jnp.mean(y, axis=-1, keepdims=True)
        var = jnp.mean(jnp.square(y - mu), axis=-1, keepdims=True)
        o_ref[...] = ((y - mu) * lax.rsqrt(var + eps) * g_ref[...] + be_ref[...]).astype(o_ref.dtype)


# ----------------------------------------------------------------------------- attention kernels

def _flash_attention_kernel(q_ref, k_ref, v_ref, kb_ref, o_ref, m_scr, l_scr, acc_scr,
                            *, scale, causal, tq, tk):
    # grid = (B, Sq//tq, Sk//tk); Sk innermost ("arbitrary"); all heads of one batch element batched.
    ik = pl.program_id(2)

    @pl.when(ik == 0)
    def _():
        m_scr[...] = jnp.full_like(m_scr, -jnp.inf)
        l_scr[...] = jnp.zeros_like(l_scr)
        acc_scr[...] = jnp.zeros_like(acc_scr)

    q = q_ref[0]     # (H, tq, dk) bf16
    k = k_ref[0]     # (H, tk, dk) bf16
    v = v_ref[0]     # (H, tk, dv) bf16

    # NOTE: the contraction depth here is d_k (small); keep tq large so the MXU pipeline stays busy.
    s = jnp.einsum('hqd,hkd->hqk', q, k, preferred_element_type=jnp.float32) * scale
    s = s + kb_ref[0]                                   # key-padding bias (1, tk), broadcasts
    if causal:
        q_idx = lax.broadcasted_iota(jnp.int32, (tq, tk), 0) + pl.program_id(1) * tq
        k_idx = lax.broadcasted_iota(jnp.int32, (tq, tk), 1) + ik * tk
        s = jnp.where((k_idx > q_idx)[None, :, :], jnp.float32(_NEG_INF), s)

    m_prev = m_scr[...]
    m_new = jnp.maximum(m_prev, jnp.max(s, axis=-1, keepdims=True))
    alpha = jnp.exp(m_prev - m_new)
    p = jnp.exp(s - m_new)
    l_scr[...] = alpha * l_scr[...] + jnp.sum(p, axis=-1, keepdims=True)
    acc_scr[...] = alpha * acc_scr[...] + jnp.einsum('hqk,hkd->hqd', p.astype(v.dtype), v,
                                                     preferred_element_type=jnp.float32)
    m_scr[...] = m_new

    @pl.when(ik == pl.num_programs(2) - 1)
    def _():
        o_ref[0] = (acc_scr[...] * pl.reciprocal(l_scr[...], approx=True)).astype(o_ref.dtype)


def _attention_probs_kernel(q_ref, k_ref, v_ref, kb_ref, ctx_ref, attn_ref, *, scale, causal):
    # Debug / reference-parity path: materializes the full (H,Sq,Sk) scores and writes probs.
    q = q_ref[0]
    k = k_ref[0]
    v = v_ref[0]
    Sq, Sk = q.shape[1], k.shape[1]
    s = jnp.einsum('hqd,hkd->hqk', q, k, preferred_element_type=jnp.float32) * scale
    s = s + kb_ref[0]
    if causal:
        q_idx = lax.broadcasted_iota(jnp.int32, (Sq, Sk), 0)
        k_idx = lax.broadcasted_iota(jnp.int32, (Sq, Sk), 1)
        s = jnp.where((k_idx > q_idx)[None, :, :], jnp.float32(_NEG_INF), s)
    s = s - jnp.max(s, axis=-1, keepdims=True)
    e = jnp.exp(s)
    p = e * pl.reciprocal(jnp.sum(e, axis=-1, keepdims=True), approx=True)
    ctx_ref[0] = jnp.einsum('hqk,hkd->hqd', p.astype(v.dtype), v,
                            preferred_element_type=jnp.float32).astype(ctx_ref.dtype)
    attn_ref[0] = p.astype(attn_ref.dtype)


# ----------------------------------------------------------------------------- pallas wrappers

def pallas_matmul(x, w, b=None, *, out_dtype=jnp.bfloat16, tm=256, tn=512, tk=1024,
                  weight_buffers=None):
    """out = x @ w (+ b); bf16 operands, f32 MXU accumulation.
    K untiled (common: K = d_model) -> no VMEM accumulator; K tiled -> f32 scratch accumulator."""
    M, K = x.shape
    N = w.shape[1]
    tm = _pick_tile(M, tm, 16)     # bf16 sublane granule
    tn = _pick_tile(N, tn, 128)
    tk = _pick_tile(K, tk, 128)
    out_shape = jax.ShapeDtypeStruct((M, N), out_dtype)
    bias = None if b is None else b.reshape(1, N).astype(jnp.float32)

    if K == tk:   # single K tile
        grid = (M // tm, N // tn)
        in_specs = [pl.BlockSpec((tm, tk), lambda i, j: (i, 0)),
                    _weight_spec((tk, tn), lambda i, j: (0, j), weight_buffers)]
        args = [x, w]
        kernel = _matmul_nobias_kernel_1k
        if bias is not None:
            in_specs.append(pl.BlockSpec((1, tn), lambda i, j: (0, j)))
            args.append(bias)
            kernel = _matmul_bias_kernel_1k
        return pl.pallas_call(
            kernel,
            out_shape=out_shape,
            grid=grid,
            in_specs=in_specs,
            out_specs=pl.BlockSpec((tm, tn), lambda i, j: (i, j)),
            compiler_params=_cparams(("parallel", "parallel")),
        )(*args)

    grid = (M // tm, N // tn, K // tk)
    in_specs = [pl.BlockSpec((tm, tk), lambda i, j, k: (i, k)),
                _weight_spec((tk, tn), lambda i, j, k: (k, j), weight_buffers)]
    args = [x, w]
    kernel = _matmul_nobias_kernel
    if bias is not None:
        in_specs.append(pl.BlockSpec((1, tn), lambda i, j, k: (0, j)))
        args.append(bias)
        kernel = _matmul_bias_kernel
    return pl.pallas_call(
        kernel,
        out_shape=out_shape,
        grid=grid,
        in_specs=in_specs,
        out_specs=pl.BlockSpec((tm, tn), lambda i, j, k: (i, j)),
        scratch_shapes=[pltpu.VMEM((tm, tn), jnp.float32)],
        compiler_params=_cparams(("parallel", "parallel", "arbitrary")),
    )(*args)


def pallas_matmul_residual_ln(x, w, b, residual, gamma, beta, *, eps=1e-5, tm=256, tk=256):
    """LayerNorm(residual + x @ w + b): matmul with fused residual-add + LN epilogue (bf16 out)."""
    M, K = x.shape
    N = w.shape[1]   # = d_model, kept whole so LN sees the full feature row
    tm = _pick_tile(M, tm, 16)
    tk = _pick_tile(K, tk, 128)
    grid = (M // tm, K // tk)
    kernel = functools.partial(_matmul_residual_ln_kernel, eps=eps)
    return pl.pallas_call(
        kernel,
        out_shape=jax.ShapeDtypeStruct((M, N), jnp.bfloat16),
        grid=grid,
        in_specs=[pl.BlockSpec((tm, tk), lambda i, k: (i, k)),
                  pl.BlockSpec((tk, N), lambda i, k: (k, 0)),
                  pl.BlockSpec((1, N), lambda i, k: (0, 0)),
                  pl.BlockSpec((tm, N), lambda i, k: (i, 0)),
                  pl.BlockSpec((1, N), lambda i, k: (0, 0)),
                  pl.BlockSpec((1, N), lambda i, k: (0, 0))],
        out_specs=pl.BlockSpec((tm, N), lambda i, k: (i, 0)),
        scratch_shapes=[pltpu.VMEM((tm, N), jnp.float32)],
        compiler_params=_cparams(("parallel", "arbitrary")),
    )(x, w, b.reshape(1, N).astype(jnp.float32), residual,
      gamma.reshape(1, N).astype(jnp.float32), beta.reshape(1, N).astype(jnp.float32))


def pallas_ffn_residual_ln(x, p, residual, gamma, beta, *, eps=1e-5, tm=128, tf=256):
    """LayerNorm(residual + relu(x@w1+b1)@w2+b2); d_ff tiled as the reduction axis (bf16 out)."""
    M, D = x.shape
    F = p["w1"].shape[1]
    tm = _pick_tile(M, tm, 16)
    tf = _pick_tile(F, tf, 128)
    grid = (M // tm, F // tf)
    kernel = functools.partial(_ffn_residual_ln_kernel, eps=eps)
    return pl.pallas_call(
        kernel,
        out_shape=jax.ShapeDtypeStruct((M, D), jnp.bfloat16),
        grid=grid,
        in_specs=[pl.BlockSpec((tm, D), lambda i, j: (i, 0)),
                  pl.BlockSpec((D, tf), lambda i, j: (0, j)),
                  pl.BlockSpec((1, tf), lambda i, j: (0, j)),
                  pl.BlockSpec((tf, D), lambda i, j: (j, 0)),
                  pl.BlockSpec((1, D), lambda i, j: (0, 0)),
                  pl.BlockSpec((tm, D), lambda i, j: (i, 0)),
                  pl.BlockSpec((1, D), lambda i, j: (0, 0)),
                  pl.BlockSpec((1, D), lambda i, j: (0, 0))],
        out_specs=pl.BlockSpec((tm, D), lambda i, j: (i, 0)),
        scratch_shapes=[pltpu.VMEM((tm, D), jnp.float32)],
        compiler_params=_cparams(("parallel", "arbitrary")),
    )(x, p["w1"], p["b1"].reshape(1, F).astype(jnp.float32), p["w2"],
      p["b2"].reshape(1, D).astype(jnp.float32),
      residual, gamma.reshape(1, D).astype(jnp.float32), beta.reshape(1, D).astype(jnp.float32))


def pallas_attention(q, k, v, key_bias, d_k, *, causal=False, return_attn=False, tq=256, tk=512):
    """q,k,v: (B,H,S,d) bf16 head-major; key_bias: (B,1,Sk) f32, 0 for valid keys / -1e9 masked.
    Default: flash path (online softmax, Sk tiled, no prob writeback).
    return_attn=True: debug/reference path returning the attention probabilities."""
    B, H, Sq, dk = q.shape
    Sk = k.shape[2]
    dv = v.shape[3]
    scale = 1.0 / math.sqrt(d_k)

    if return_attn:
        ctx, attn = pl.pallas_call(
            functools.partial(_attention_probs_kernel, scale=scale, causal=causal),
            out_shape=(jax.ShapeDtypeStruct((B, H, Sq, dv), jnp.bfloat16),
                       jax.ShapeDtypeStruct((B, H, Sq, Sk), jnp.float32)),
            grid=(B,),
            in_specs=[pl.BlockSpec((1, H, Sq, dk), lambda b: (b, 0, 0, 0)),
                      pl.BlockSpec((1, H, Sk, dk), lambda b: (b, 0, 0, 0)),
                      pl.BlockSpec((1, H, Sk, dv), lambda b: (b, 0, 0, 0)),
                      pl.BlockSpec((1, 1, Sk), lambda b: (b, 0, 0))],
            out_specs=(pl.BlockSpec((1, H, Sq, dv), lambda b: (b, 0, 0, 0)),
                       pl.BlockSpec((1, H, Sq, Sk), lambda b: (b, 0, 0, 0))),
            compiler_params=_cparams(("parallel",)),
        )(q, k, v, key_bias)
        return ctx, attn

    tq = _pick_tile(Sq, tq, 16)     # sublane granule (bf16)
    tk = _pick_tile(Sk, tk, 128)    # also the lane dim of the key-bias block -> 128-granule
    grid = (B, Sq // tq, Sk // tk)
    kernel = functools.partial(_flash_attention_kernel, scale=scale, causal=causal, tq=tq, tk=tk)
    ctx = pl.pallas_call(
        kernel,
        out_shape=jax.ShapeDtypeStruct((B, H, Sq, dv), jnp.bfloat16),
        grid=grid,
        in_specs=[pl.BlockSpec((1, H, tq, dk), lambda b, iq, ik: (b, 0, iq, 0)),
                  pl.BlockSpec((1, H, tk, dk), lambda b, iq, ik: (b, 0, ik, 0)),
                  pl.BlockSpec((1, H, tk, dv), lambda b, iq, ik: (b, 0, ik, 0)),
                  pl.BlockSpec((1, 1, tk), lambda b, iq, ik: (b, 0, ik))],
        out_specs=pl.BlockSpec((1, H, tq, dv), lambda b, iq, ik: (b, 0, iq, 0)),
        scratch_shapes=[pltpu.VMEM((H, tq, 1), jnp.float32),
                        pltpu.VMEM((H, tq, 1), jnp.float32),
                        pltpu.VMEM((H, tq, dv), jnp.float32)],
        compiler_params=_cparams(("parallel", "parallel", "arbitrary")),
    )(q, k, v, key_bias)
    return ctx, None


# ----------------------------------------------------------------------------- model glue (plain JAX)

def sinusoidal_pe(max_len, d_model):
    pos = jnp.arange(max_len, dtype=jnp.float32)[:, None]
    i = jnp.arange(d_model, dtype=jnp.float32)[None, :]
    angle = pos / jnp.power(10000.0, (2.0 * jnp.floor(i / 2.0)) / d_model)
    pe = jnp.where(jnp.mod(jnp.arange(d_model), 2) == 0, jnp.sin(angle), jnp.cos(angle))
    return pe.astype(jnp.float32)


def _dense_init(key, fan_in, fan_out):
    kw, kb = jax.random.split(key)
    bound = 1.0 / math.sqrt(fan_in)
    w = jax.random.uniform(kw, (fan_in, fan_out), jnp.float32, -bound, bound)
    b = jax.random.uniform(kb, (fan_out,), jnp.float32, -bound, bound)
    return w.astype(jnp.bfloat16), b          # weights bf16 (MXU-native), biases f32


def init_translator_params(key, *, vocab_a, vocab_b, d_model, d_ff, n_heads, d_k, d_v, N,
                           max_seq_len):
    keys = iter(jax.random.split(key, 16 + N * 32))
    nk = lambda: next(keys)

    def mha_params():
        wq, bq = _dense_init(nk(), d_model, n_heads * d_k)
        wk, bk = _dense_init(nk(), d_model, n_heads * d_k)
        wv, bv = _dense_init(nk(), d_model, n_heads * d_v)
        wo, bo = _dense_init(nk(), n_heads * d_v, d_model)
        # Pre-fused projection weights (QKV for self-attention, KV for cross-attention).
        return dict(
            wq=wq, bq=bq,
            wkv=jnp.concatenate([wk, wv], axis=1), bkv=jnp.concatenate([bk, bv], axis=0),
            wqkv=jnp.concatenate([wq, wk, wv], axis=1), bqkv=jnp.concatenate([bq, bk, bv], axis=0),
            wo=wo, bo=bo)

    def ln_params():
        return dict(g=jnp.ones((d_model,), jnp.float32), b=jnp.zeros((d_model,), jnp.float32))

    def ffn_params():
        w1, b1 = _dense_init(nk(), d_model, d_ff)
        w2, b2 = _dense_init(nk(), d_ff, d_model)
        return dict(w1=w1, b1=b1, w2=w2, b2=b2)

    enc_layers = [dict(attn=mha_params(), ln1=ln_params(), ffn=ffn_params(), ln2=ln_params())
                  for _ in range(N)]
    dec_layers = [dict(self_attn=mha_params(), ln1=ln_params(),
                       cross_attn=mha_params(), ln2=ln_params(),
                       ffn=ffn_params(), ln3=ln_params())
                  for _ in range(N)]
    emb_a = jax.random.normal(nk(), (vocab_a, d_model), jnp.float32) * 0.02
    emb_b = jax.random.normal(nk(), (vocab_b, d_model), jnp.float32) * 0.02
    # Final projection (nn.Linear bias=False): bf16 weight, vocab padded to a multiple of 128 so the
    # output tile is lane-dense (no masked partial stores; worst on v5e's single vst slot).
    vocab_b_pad = _pad_to_multiple(vocab_b, 128)
    w_out = jnp.zeros((d_model, vocab_b_pad), jnp.float32)
    w_out = w_out.at[:, :vocab_b].set(jax.random.normal(nk(), (d_model, vocab_b), jnp.float32) * 0.02)
    return dict(emb_a=emb_a, emb_b=emb_b, pe=sinusoidal_pe(max_seq_len, d_model),
                enc=enc_layers, dec=dec_layers, w_out=w_out.astype(jnp.bfloat16))


def _key_bias(key_pad):
    # (B, Sk) nonzero = padded key -> (B, 1, Sk) additive f32 bias (0 keep / -1e9 masked),
    # matching the reference's masked_fill(mask, -1e9); no dense (B,Sq,Sk) mask in HBM.
    return jnp.where(key_pad != 0, jnp.float32(_NEG_INF), jnp.float32(0.0))[:, None, :]


def _mha(p, x_q, x_kv, key_bias, ln, *, n_heads, d_k, d_v, causal=False, return_attn=False):
    """Multi-head attention; the output projection fuses the residual-add + LayerNorm."""
    B, Sq, D = x_q.shape
    Sk = x_kv.shape[1]
    Nq = n_heads * d_k

    if x_q is x_kv:
        # self-attention: one fused QKV matmul (x streamed from HBM once)
        qkv = pallas_matmul(x_q.reshape(B * Sq, D), p["wqkv"], p["bqkv"])
        q2d, k2d, v2d = qkv[:, :Nq], qkv[:, Nq:2 * Nq], qkv[:, 2 * Nq:]
    else:
        # cross-attention: Q from the decoder stream, fused KV from the encoder output
        q2d = pallas_matmul(x_q.reshape(B * Sq, D), p["wq"], p["bq"])
        kv = pallas_matmul(x_kv.reshape(B * Sk, D), p["wkv"], p["bkv"])
        k2d, v2d = kv[:, :Nq], kv[:, Nq:]

    # TODO(synk): head-major relayout + column splits still go through XLA/HBM (see header note).
    q = q2d.reshape(B, Sq, n_heads, d_k).transpose(0, 2, 1, 3)
    k = k2d.reshape(B, Sk, n_heads, d_k).transpose(0, 2, 1, 3)
    v = v2d.reshape(B, Sk, n_heads, d_v).transpose(0, 2, 1, 3)

    ctx, attn = pallas_attention(q, k, v, key_bias, d_k, causal=causal, return_attn=return_attn)
    ctx2d = ctx.transpose(0, 2, 1, 3).reshape(B * Sq, n_heads * d_v)

    out = pallas_matmul_residual_ln(ctx2d, p["wo"], p["bo"],
                                    x_q.reshape(B * Sq, D), ln["g"], ln["b"])
    return out.reshape(B, Sq, D), attn


def _embed(emb_table, pe, tokens, d_model):
    # TODO(synk): embedding gather + PE add left in plain JAX (small gather, no clean Pallas win).
    S = tokens.shape[1]
    x = emb_table[tokens] * math.sqrt(d_model) + pe[:S][None, :, :]
    return x.astype(jnp.bfloat16)


def _encoder(params, inputs_a, enc_key_pad, cfg, return_attn):
    B, Sa = inputs_a.shape
    D = cfg["d_model"]
    x = _embed(params["emb_a"], params["pe"], inputs_a, D)
    kbias = _key_bias(enc_key_pad)
    enc_attns = []
    for layer in params["enc"]:
        x, attn = _mha(layer["attn"], x, x, kbias, layer["ln1"],
                       n_heads=cfg["n_heads"], d_k=cfg["d_k"], d_v=cfg["d_v"],
                       causal=False, return_attn=return_attn)
        x = pallas_ffn_residual_ln(x.reshape(B * Sa, D), layer["ffn"], x.reshape(B * Sa, D),
                                   layer["ln2"]["g"], layer["ln2"]["b"]).reshape(B, Sa, D)
        enc_attns.append(attn)
    return x, enc_attns


def _decoder(params, inputs_b, enc_out, dec_key_pad, cross_key_pad, cfg, return_attn):
    B, Sb = inputs_b.shape
    D = cfg["d_model"]
    x = _embed(params["emb_b"], params["pe"], inputs_b, D)
    self_bias = _key_bias(dec_key_pad)     # target padding; causal term generated in-kernel
    cross_bias = _key_bias(cross_key_pad)  # source padding (same as the reference decoder builds)
    dec_attns, dec_enc_attns = [], []
    for layer in params["dec"]:
        x, sattn = _mha(layer["self_attn"], x, x, self_bias, layer["ln1"],
                        n_heads=cfg["n_heads"], d_k=cfg["d_k"], d_v=cfg["d_v"],
                        causal=True, return_attn=return_attn)
        x, cattn = _mha(layer["cross_attn"], x, enc_out, cross_bias, layer["ln2"],
                        n_heads=cfg["n_heads"], d_k=cfg["d_k"], d_v=cfg["d_v"],
                        causal=False, return_attn=return_attn)
        x = pallas_ffn_residual_ln(x.reshape(B * Sb, D), layer["ffn"], x.reshape(B * Sb, D),
                                   layer["ln3"]["g"], layer["ln3"]["b"]).reshape(B, Sb, D)
        dec_attns.append(sattn)
        dec_enc_attns.append(cattn)
    return x, dec_attns, dec_enc_attns


def translator_forward(params, inputs_a, inputs_b, cfg, *, return_attn=False):
    """Masks are supplied in factored form (key-padding vectors derived from the pad indices, as the
    reference builds them); the decoder's causal structure is generated in-kernel."""
    enc_key_pad = (inputs_a == cfg["p_idx_a"]).astype(jnp.int32)
    dec_key_pad = (inputs_b == cfg["p_idx_b"]).astype(jnp.int32)

    out_enc, enc_attns = _encoder(params, inputs_a, enc_key_pad, cfg, return_attn)
    out_dec, dec_attns, dec_enc_attns = _decoder(params, inputs_b, out_enc,
                                                 dec_key_pad, enc_key_pad, cfg, return_attn)
    B, Sb, D = out_dec.shape
    vocab_b = cfg["vocab_b"]
    # Final projection: weight-streaming bf16 matmul (bias-free), lane-dense padded output,
    # 3-deep buffering requested on the weight stream.
    logits = pallas_matmul(out_dec.reshape(B * Sb, D), params["w_out"],
                           out_dtype=jnp.float32, tn=512, weight_buffers=3)
    logits = logits.reshape(B, Sb, -1)[:, :, :vocab_b]
    return logits, enc_attns, dec_attns, dec_enc_attns


# ----------------------------------------------------------------------------- main

if __name__ == "__main__":
    key = jax.random.PRNGKey(0)
    B, Sa, Sb = 2, 8, 8
    vocab_a, vocab_b = 17, 19
    d_model, d_ff, n_heads, N = 32, 64, 4, 2
    d_k = d_v = d_model // n_heads
    p_idx_a = p_idx_b = 0
    max_seq_len = 64

    k_param, k_a, k_b = jax.random.split(key, 3)
    params = init_translator_params(
        k_param, vocab_a=vocab_a, vocab_b=vocab_b, d_model=d_model, d_ff=d_ff,
        n_heads=n_heads, d_k=d_k, d_v=d_v, N=N, max_seq_len=max_seq_len)

    inputs_a = jax.random.randint(k_a, (B, Sa), 1, vocab_a, dtype=jnp.int32)
    inputs_b = jax.random.randint(k_b, (B, Sb), 1, vocab_b, dtype=jnp.int32)
    inputs_a = inputs_a.at[:, -2:].set(p_idx_a)   # some source padding
    inputs_b = inputs_b.at[:, -1:].set(p_idx_b)   # some target padding

    cfg = dict(d_model=d_model, n_heads=n_heads, d_k=d_k, d_v=d_v,
               p_idx_a=p_idx_a, p_idx_b=p_idx_b, vocab_b=vocab_b)

    # Performance path: flash attention, no attention-probability writeback.
    out, enc_attns, dec_attns, dec_enc_attns = translator_forward(
        params, inputs_a, inputs_b, cfg, return_attn=False)
    jax.block_until_ready(out)
    assert out.shape == (B, Sb, vocab_b)
    assert bool(jnp.all(jnp.isfinite(out)))
    assert all(a is None for a in enc_attns + dec_attns + dec_enc_attns)

    # Reference-parity / debug path: attention probabilities are materialized and returned,
    # matching the original module's outputs.
    out_dbg, enc_attns, dec_attns, dec_enc_attns = translator_forward(
        params, inputs_a, inputs_b, cfg, return_attn=True)
    jax.block_until_ready(out_dbg)
    assert out_dbg.shape == (B, Sb, vocab_b)
    assert len(enc_attns) == N and enc_attns[0].shape == (B, n_heads, Sa, Sa)
    assert len(dec_attns) == N and dec_attns[0].shape == (B, n_heads, Sb, Sb)
    assert len(dec_enc_attns) == N and dec_enc_attns[0].shape == (B, n_heads, Sb, Sa)
    # The two attention paths compute the same forward (flash vs dense softmax), modulo bf16 rounding.
    assert bool(jnp.allclose(out, out_dbg, atol=5e-2, rtol=5e-2))

    print("KERNEL_OK")
</pallas_src>

<mosaic_0001>
module attributes {stable_mosaic.version = 11 : i64} {
  func.func @_matmul_bias_kernel_1k(%arg0: i32, %arg1: i32, %arg2: memref<16x32xbf16, #tpu.memory_space<vmem>>, %arg3: memref<32x96xbf16, #tpu.memory_space<vmem>>, %arg4: memref<1x96xf32, #tpu.memory_space<vmem>>, %arg5: memref<16x96xbf16, #tpu.memory_space<vmem>>) attributes {dimension_semantics = [#tpu.dimension_semantics<parallel>, #tpu.dimension_semantics<parallel>], iteration_bounds = array<i64: 1, 1>, scalar_prefetch = 0 : i64, scratch_operands = 0 : i64, tpu.core_type = #tpu.core_type<tc>, window_params = [{transform_indices = @transform_0, window_bounds = array<i64: 16, 32>}, {transform_indices = @transform_1, window_bounds = array<i64: 32, 96>}, {transform_indices = @transform_2, window_bounds = array<i64: 1, 96>}, {transform_indices = @transform_3, window_bounds = array<i64: 16, 96>}]} {
    %c0 = arith.constant 0 : index
    %c0_0 = arith.constant 0 : index
    %0 = vector.load %arg2[%c0, %c0_0] : memref<16x32xbf16, #tpu.memory_space<vmem>>, vector<16x32xbf16>
    %c0_1 = arith.constant 0 : index
    %c0_2 = arith.constant 0 : index
    %1 = vector.load %arg3[%c0_1, %c0_2] : memref<32x96xbf16, #tpu.memory_space<vmem>>, vector<32x96xbf16>
    %cst = arith.constant dense<0.000000e+00> : vector<16x96xf32>
    %2 = tpu.matmul %0, %1, %cst {dimension_numbers = #tpu.dot_dimension_numbers<[1], [0], [0], [1], [0, 0, 1, 1], [], []>} : vector<16x32xbf16>, vector<32x96xbf16>, vector<16x96xf32> -> vector<16x96xf32>
    %c0_3 = arith.constant 0 : index
    %c0_4 = arith.constant 0 : index
    %3 = vector.load %arg4[%c0_3, %c0_4] : memref<1x96xf32, #tpu.memory_space<vmem>>, vector<1x96xf32>
    %4 = vector.broadcast %3 : vector<1x96xf32> to vector<16x96xf32>
    %5 = arith.addf %2, %4 : vector<16x96xf32>
    %6 = arith.truncf %5 : vector<16x96xf32> to vector<16x96xbf16>
    %c0_5 = arith.constant 0 : index
    %c0_6 = arith.constant 0 : index
    %7 = vector.load %arg5[%c0_5, %c0_6] : memref<16x96xbf16, #tpu.memory_space<vmem>>, vector<16x96xbf16>
    tpu.vector_store %arg5[%c0_5, %c0_6], %6 {strides = array<i32>} : memref<16x96xbf16, #tpu.memory_space<vmem>>, vector<16x96xbf16>,
    return
  }
  func.func @transform_0(%arg0: i32, %arg1: i32) -> (i32, i32) {
    %c0_i32 = arith.constant 0 : i32
    %c0_i32_0 = arith.constant 0 : i32
    return %arg0, %c0_i32 : i32, i32
  }
  func.func @transform_1(%arg0: i32, %arg1: i32) -> (i32, i32) {
    %c0_i32 = arith.constant 0 : i32
    %c0_i32_0 = arith.constant 0 : i32
    return %c0_i32, %arg1 : i32, i32
  }
  func.func @transform_2(%arg0: i32, %arg1: i32) -> (i32, i32) {
    %c0_i32 = arith.constant 0 : i32
    %c0_i32_0 = arith.constant 0 : i32
    return %c0_i32, %arg1 : i32, i32
  }
  func.func @transform_3(%arg0: i32, %arg1: i32) -> (i32, i32) {
    %c0_i32 = arith.constant 0 : i32
    return %arg0, %arg1 : i32, i32
  }
}

</mosaic_0001>

<llo_original>
// kernel: tpu_custom_call.1
$region0: #{tpu_custom_call.1}
  #allocation0 [shape = 'u32[]', space=smem, size = 0x4, offset = 0x4, fixed_abs, tag = 'smem constant byte address 0x4 - core index']
  #allocation1 [shape = 'u32[144,128]{1,0:T(1,128)}', space=vmem, size = 0x12000, scoped, tag = 'internal scratch']
  %s0 = inlined_call_operand.hbm [shape: bf16[16,32], index: 0, kind: input, shape index: {}]
  %s1 = inlined_call_operand.hbm [shape: bf16[32,96], index: 1, kind: input, shape index: {}]
  %s2 = inlined_call_operand.vmem [shape: f32[1,96], index: 2, kind: input, shape index: {}]
  %s3 = inlined_call_operand.hbm [shape: bf16[16,96], index: 3, kind: output, shape index: {}]
  %s4 = sld [smem:[#allocation0]]
  $region30: #{tpu_custom_call.1} parent=0
    _
  %s6 = ssub.s32 1, %s4
  %s7 = scalar_select 0, %s6, %s4
  $region1: #{tpu_custom_call.1} parent=0
    #allocation2 [shape = 'u8[4096]{0}', space=vmem, size = 0x1000, scoped, tag = 'input window, operand 0, single buffered']
    #allocation3 [shape = 's32[1]{0}', space=sflag, size = 0x4, scoped, tag = 'scoped memory for tpu_custom_call.1']
    #allocation4 [shape = 's32[1]{0}', space=sflag, size = 0x4, scoped, tag = 'scoped memory for tpu_custom_call.1']
    #allocation5 [shape = 'u8[8192]{0}', space=vmem, size = 0x2000, scoped, tag = 'input window, operand 1, single buffered']
    #allocation6 [shape = 's32[1]{0}', space=sflag, size = 0x4, scoped, tag = 'scoped memory for tpu_custom_call.1']
    #allocation7 [shape = 'u8[4096]{0}', space=vmem, size = 0x1000, scoped, tag = 'output window, operand 0, single buffered']
    %8 = vsyncpa [#allocation3], 0
    %9 = vsyncpa [#allocation6], 0
    %10 = vsyncpa [#allocation4], 0
    // Predicated region
    $region2: #{tpu_custom_call.1} parent=1 // pred_check
      _
    $region3: #{tpu_custom_call.1} parent=1 // pred_check_branch
      %12 = sbr.rel (0) target = $region5
    $region4: #{tpu_custom_call.1} parent=1 // pred_region
      %s14 = ssub.s32 128, 128
      %15 = vsyncadd [#allocation3], %s14
      %s16 = sshll.u32 [#allocation2], 4
      %s17 = int_to_ptr.vmem [resolvable:$true] %s16
      %22 = dma.hbm_to_vmem [thread:$0]  %s0, 128, %s17, [#allocation3], 64, 64, 4
    $region5: #{tpu_custom_call.1} parent=1 // pred_fallthru
      _
    // Predicated region
    $region6: #{tpu_custom_call.1} parent=1 // pred_check
      _
    $region7: #{tpu_custom_call.1} parent=1 // pred_check_branch
      %24 = sbr.rel (0) target = $region9
    $region8: #{tpu_custom_call.1} parent=1 // pred_region
      %s26 = ssub.s32 256, 256
      %27 = vsyncadd [#allocation6], %s26
      %s28 = sshll.u32 [#allocation5], 4
      %s29 = int_to_ptr.vmem [resolvable:$true] %s28
      %34 = dma.hbm_to_vmem [thread:$0]  %s1, 256, %s29, [#allocation6], 64, 64, 4
    $region9: #{tpu_custom_call.1} parent=1 // pred_fallthru
      _
    // Predicated region
    $region10: #{tpu_custom_call.1} parent=1 // pred_check
      _
    $region11: #{tpu_custom_call.1} parent=1 // pred_check_branch
      %36 = sbr.rel (0) target = $region13
    $region12: #{tpu_custom_call.1} parent=1 // pred_region
      _
    $region13: #{tpu_custom_call.1} parent=1 // pred_fallthru
      _
    // Predicated region
    $region14: #{tpu_custom_call.1} parent=1 // pred_check
      _
    $region15: #{tpu_custom_call.1} parent=1 // pred_check_branch
      %38 = sbr.rel (0) target = $region17
    $region16: #{tpu_custom_call.1} parent=1 // pred_region
      %39 = dma.done [#allocation3], 128
    $region17: #{tpu_custom_call.1} parent=1 // pred_fallthru
      _
    // Predicated region
    $region18: #{tpu_custom_call.1} parent=1 // pred_check
      _
    $region19: #{tpu_custom_call.1} parent=1 // pred_check_branch
      %41 = sbr.rel (0) target = $region21
    $region20: #{tpu_custom_call.1} parent=1 // pred_region
      %42 = dma.done [#allocation6], 256
    $region21: #{tpu_custom_call.1} parent=1 // pred_fallthru
      _
    %v44 = vld [vmem:[#allocation2] sm:$0xf]
    %v45 = vld [vmem:[#allocation2 + $0x4] sm:$0xf]
    %v46 = vld [vmem:[#allocation5] sm:$0xf]
    %v47 = vld [vmem:[#allocation5 + $0x4] sm:$0xf]
    %v48 = vld [vmem:[#allocation5 + $0x8] sm:$0xf]
    %v49 = vld [vmem:[#allocation5 + $0xc] sm:$0xf]
    %v50 = vld [vmem:[%s2] sm:$0x1]
    %v52 = vlaneseq
    %v53 = vshrl.u32 %v52, 7
    %v54 = vsub.s32 0, %v53
    %v55 = vrot.slane %v50, %v54
    %v59 = vunpack.c.l.b16 %v44
    %v60 = vunpack.c.l.b16 %v45
    %v61 = vpack.c.b16 %v60, %v59
    %v66 = vunpack.c.l.b16 %v46
    %v67 = vunpack.c.l.b16 %v47
    %v68 = vunpack.c.l.b16 %v48
    %v69 = vunpack.c.l.b16 %v49
    %v70 = vpack.c.b16 %v67, %v66
    %v71 = vpack.c.b16 %v69, %v68
    %vm74 = vcmask 261120
    %v76 = vsel %vm74, %v61, 0
    %78 = vmatprep.subr.bf16.mxu0 0
    %79 = vmatpush1.bf16.msra.mxu0 %v70
    %80 = vmatprep.subr.bf16.mxu0 0
    %81 = vmatpush1.bf16.msra.mxu0 %v71
    %82 = vmatprep.subr.bf16.mxu0 0
    %83 = vmatpush1.bf16.msra.mxu0 0
    %84 = vmatprep.subr.bf16.mxu0 0
    %85 = vmatpush1.bf16.msra.mxu0 0
    %86 = vmatprep.subr.bf16.mxu0 0
    %87 = vmatpush1.bf16.msra.mxu0 0
    %88 = vmatprep.subr.bf16.mxu0 0
    %89 = vmatpush1.bf16.msra.mxu0 0
    %90 = vmatprep.subr.bf16.mxu0 0
    %91 = vmatpush1.bf16.msra.mxu0 0
    %92 = vmatprep.subr.bf16.mxu0 0
    %93 = vmatpush1.bf16.msra.mxu0 0
    %94 = vmatprep.subr.bf16.mxu0 0
    %95 = vmatpush1.bf16.msra.mxu0 0
    %96 = vmatprep.subr.bf16.mxu0 0
    %97 = vmatpush1.bf16.msra.mxu0 0
    %98 = vmatprep.subr.bf16.mxu0 0
    %99 = vmatpush1.bf16.msra.mxu0 0
    %100 = vmatprep.subr.bf16.mxu0 0
    %101 = vmatpush1.bf16.msra.mxu0 0
    %102 = vmatprep.subr.bf16.mxu0 0
    %103 = vmatpush1.bf16.msra.mxu0 0
    %104 = vmatprep.subr.bf16.mxu0 0
    %105 = vmatpush1.bf16.msra.mxu0 0
    %106 = vmatprep.subr.bf16.mxu0 0
    %107 = vmatpush1.bf16.msra.mxu0 0
    %108 = vmatprep.subr.bf16.mxu0 0
    %109 = vmatpush1.bf16.msra.mxu0 0
    %110 = vmatprep.mubr.bf16.mxu0 0
    %111 = vmatmul.mubr.bf16.gmra.mrb[0].mxu0 %v76
    %v112 = vpop.f32.mrb[0].mxu0
    %v113 = vadd.f32 %v55, %v112
    %v114 = vpop.f32.mrb[0].mxu0
    %v115 = vpop.f32.mrb[0].mxu0
    %v116 = vadd.f32 %v55, %v115
    %v117 = vpop.f32.mrb[0].mxu0
    %118 = vdwg.mxu0
    %v119 = vpack.c.bf16 %v116, %v113
    %v121 = vunpack.c.l.b16 %v119
    %v122 = vunpack.c.h.b16 %v119
    %v123 = vpack.c.b16 %v121, %v121
    %v124 = vpack.c.b16 %v122, %v122
    %vm127 = vcmask 781312
    %128 = vst.msk [vmem:[#allocation7] sm:$0xf] %vm127, %v123
    %129 = vst.msk [vmem:[#allocation7 + $0x4] sm:$0xf] %vm127, %v124
    // Predicated region
    $region22: #{tpu_custom_call.1} parent=1 // pred_check
      _
    $region23: #{tpu_custom_call.1} parent=1 // pred_check_branch
      %131 = sbr.rel (0) target = $region25
    $region24: #{tpu_custom_call.1} parent=1 // pred_region
      %s133 = ssub.s32 128, 128
      %134 = vsyncadd [#allocation4], %s133
      %s135 = sshll.u32 [#allocation7], 4
      %s136 = int_to_ptr.vmem [resolvable:$true] %s135
      %141 = dma.vmem_to_hbm [thread:$0]  %s136, 128, %s3, [#allocation4], 64, 64, 4
    $region25: #{tpu_custom_call.1} parent=1 // pred_fallthru
      _
    // Predicated region
    $region26: #{tpu_custom_call.1} parent=1 // pred_check
      _
    $region27: #{tpu_custom_call.1} parent=1 // pred_check_branch
      %143 = sbr.rel (0) target = $region29
    $region28: #{tpu_custom_call.1} parent=1 // pred_region
      %144 = dma.done [#allocation4], 128
    $region29: #{tpu_custom_call.1} parent=1 // pred_fallthru
      _
    %145 = vsyncpa [#allocation3], 1
    %146 = vsyncpa [#allocation6], 1
    %147 = vsyncpa [#allocation4], 1

</llo_original>
